<compile_context>
chip_gen: v7x
topology: tpu7x:2x2x1
jax: 0.10.0
libtpu: 0.0.40
codegen_flags: <defaults>
</compile_context>

<pallas_src>
import functools

import jax
import jax.numpy as jnp
import numpy as np
from jax.experimental import pallas as pl
from jax.experimental.pallas import tpu as pltpu


def _planar_flow_kernel(z_ref, wT_ref, uhatT_ref, b_ref, c_ref,
                        z_out_ref, ldj_ref, *, num_flows):
    """All `num_flows` planar transforms fused for one batch tile.

    z_ref     : (TN, D)  VMEM   input latents (natural layout)
    wT_ref    : (D, K)   VMEM   w_k as columns (f32, resident across grid)
    uhatT_ref : (D, K)   VMEM   precomputed u_hat_k as columns (f32, resident)
    b_ref     : (K,)     SMEM   per-flow bias scalars
    c_ref     : (K, K)   SMEM   C[k, j] = w_k . u_hat_j   (C[k, k] = w_k . u_hat_k)
    z_out_ref : (TN, D)  VMEM   transformed latents
    ldj_ref   : (1, TN)  VMEM   lane-dense log-det-jacobian output
    """
    # One in-kernel transpose: everything downstream is lane-dense (batch on lanes).
    zT = z_ref[...].astype(jnp.float32).T                              # (D, TN)

    # s_k = w_k . z0 for every flow: dense VPU mul + 4-deep sublane reduce each.
    s = [jnp.sum(wT_ref[:, k:k + 1] * zT, axis=0, keepdims=True)       # (1, TN)
         for k in range(num_flows)]

    # Sequential per-flow scalar chain, entirely on lane-dense (1, TN) rows.
    # wzb_k = w_k . z^{(k)} + b_k = s_k + b_k + sum_{j<k} C[k, j] * t_j
    t = []
    ldj_prod = None
    for k in range(num_flows):
        wzb = s[k] + b_ref[k]
        for j in range(k):                                             # coupling via scalars
            wzb = wzb + c_ref[k, j] * t[j]
        t_k = jnp.tanh(wzb)                                            # EUP, lane-dense
        t.append(t_k)
        factor = jnp.abs(1.0 + (1.0 - t_k * t_k) * c_ref[k, k])
        ldj_prod = factor if ldj_prod is None else ldj_prod * factor

    # z_K = z0 + sum_k u_hat_k * t_k   (rank-K update, accumulated lane-dense).
    zT_new = zT
    for k in range(num_flows):
        zT_new = zT_new + uhatT_ref[:, k:k + 1] * t[k]

    z_out_ref[...] = zT_new.T.astype(z_out_ref.dtype)
    ldj_ref[...] = jnp.log(ldj_prod)                                   # single EUP log


def _round_up(x, m):
    return ((int(x) + m - 1) // m) * m


def planar_flow_forward(z0, u, w, b, *, batch_tile=None):
    """z0: (N, D); u, w: (K, D); b: (K,) or (K, 1).

    Returns (z_K with shape/dtype of z0, log_det_j (N,) float32).
    """
    N, D = z0.shape
    K = u.shape[0]
    if K == 0:                                      # module with num_flows == 0
        return z0, jnp.zeros((N,), jnp.float32)

    # ---- hoisted, z-independent parameter math (computed once, outside kernel) ----
    uf = u.astype(jnp.float32)
    wf = w.astype(jnp.float32)
    bf = jnp.reshape(b, (K,)).astype(jnp.float32)
    uw = jnp.sum(wf * uf, axis=-1, keepdims=True)                    # (K, 1)
    m_uw = -1.0 + jax.nn.softplus(uw)
    w_norm_sq = jnp.sum(wf * wf, axis=-1, keepdims=True)             # (K, 1)
    u_hat = uf + (m_uw - uw) * wf / w_norm_sq                        # (K, D)
    coup = wf @ u_hat.T                                              # (K, K): C[k, j] = w_k . u_hat_j
    wT = wf.T                                                        # (D, K)
    u_hatT = u_hat.T                                                 # (D, K)

    # ---- batch tiling ---------------------------------------------------------
    if batch_tile is None:
        cap = 8192                                   # 8192 x 32 f32 = 1 MiB payload / tile
        if N <= 1024:
            batch_tile = N                           # single exact block, no masking
        else:
            # >= 2 tiles so a megacore part (v7x) can split the "parallel" axis.
            batch_tile = min(cap, _round_up(pl.cdiv(N, 2), 128))
    else:
        batch_tile = max(8, (int(batch_tile) // 8) * 8)
    grid_n = pl.cdiv(N, batch_tile)
    if grid_n > 1 and batch_tile % 128 != 0:
        batch_tile = _round_up(batch_tile, 128)      # lane-aligned ldj / z blocks
        grid_n = pl.cdiv(N, batch_tile)
    # Ragged N: the last grid step is a partial (masked) edge block -- no jnp.pad,
    # no extra HBM pass over z0.

    # VMEM budget: in/out z tiles (lane-padded to 128 for safety), double-buffered,
    # plus headroom for the transposed working set and resident params.
    tile_bytes = batch_tile * 128 * 4
    vmem_limit = int(min(64 * 1024 * 1024, 4 * tile_bytes + 24 * 1024 * 1024))

    kernel = functools.partial(_planar_flow_kernel, num_flows=K)
    z_out, ldj = pl.pallas_call(
        kernel,
        out_shape=(
            jax.ShapeDtypeStruct((N, D), z0.dtype),
            jax.ShapeDtypeStruct((1, N), jnp.float32),
        ),
        grid_spec=pltpu.PrefetchScalarGridSpec(
            num_scalar_prefetch=0,
            grid=(grid_n,),
            in_specs=[
                pl.BlockSpec((batch_tile, D), lambda i: (i, 0)),        # z tile over batch
                pl.BlockSpec((D, K), lambda i: (0, 0)),                 # w^T      (resident)
                pl.BlockSpec((D, K), lambda i: (0, 0)),                 # u_hat^T  (resident)
                pl.BlockSpec(memory_space=pltpu.MemorySpace.SMEM),      # b scalars
                pl.BlockSpec(memory_space=pltpu.MemorySpace.SMEM),      # C[k, j] scalars
            ],
            out_specs=[
                pl.BlockSpec((batch_tile, D), lambda i: (i, 0)),        # z_K tile
                pl.BlockSpec((1, batch_tile), lambda i: (0, i)),        # lane-dense ldj
            ],
        ),
        compiler_params=pltpu.CompilerParams(
            dimension_semantics=("parallel",),       # lets v7x split tiles across both TCs
            vmem_limit_bytes=vmem_limit,
        ),
    )(z0, wT, u_hatT, bf, coup)

    return z_out, ldj[0]


def planar_flow_reference(z0, u, w, b):
    """Pure-JAX reference matching the PyTorch Planar flow semantics."""
    z = z0.astype(jnp.float32)
    ldj = jnp.zeros((z0.shape[0],), jnp.float32)
    for k in range(u.shape[0]):
        uk = u[k][None, :]                                   # (1, D)
        wk = w[k][None, :]                                   # (1, D)
        bk = jnp.reshape(b, (u.shape[0], 1))[k][None, :]     # (1, 1)
        uw = jnp.sum(wk * uk, axis=-1, keepdims=True)
        m_uw = -1.0 + jax.nn.softplus(uw)
        u_hat = uk + (m_uw - uw) * wk / jnp.sum(wk * wk, axis=-1, keepdims=True)
        wzb = jnp.sum(z * wk, axis=-1, keepdims=True) + bk
        z = z + u_hat * jnp.tanh(wzb)
        der_h = 1.0 - jnp.tanh(wzb) ** 2
        ldj = ldj + jnp.log(jnp.abs(1.0 + der_h[:, 0] * jnp.sum(wk * u_hat)))
    return z, ldj


if __name__ == "__main__":
    key = jax.random.PRNGKey(0)
    k1, k2, k3, k4, k5, k6 = jax.random.split(key, 6)

    # --- case 1: module-typical small shapes (single exact block) ---------------
    N1, D1, K1 = 16, 32, 3            # num_samples, class_dim, num_flows
    z0_1 = jax.random.normal(k1, (N1, D1), jnp.float32)
    u1 = 0.1 * jax.random.normal(k2, (K1, D1), jnp.float32)   # ~ N(0, 0.1) init
    w1 = 0.1 * jax.random.normal(k3, (K1, D1), jnp.float32)
    b1 = jnp.zeros((K1, 1), jnp.float32)

    z1, ldj1 = planar_flow_forward(z0_1, u1, w1, b1)
    jax.block_until_ready((z1, ldj1))
    z1_ref, ldj1_ref = planar_flow_reference(z0_1, u1, w1, b1)
    np.testing.assert_allclose(np.asarray(z1), np.asarray(z1_ref), rtol=2e-5, atol=2e-5)
    np.testing.assert_allclose(np.asarray(ldj1), np.asarray(ldj1_ref), rtol=2e-5, atol=2e-5)

    # --- case 2: multi-tile grid with a masked (ragged) edge block --------------
    N2, D2, K2 = 1000, 32, 4
    z0_2 = jax.random.normal(k4, (N2, D2), jnp.float32)
    u2 = 0.1 * jax.random.normal(k5, (K2, D2), jnp.float32)
    w2 = 0.1 * jax.random.normal(k6, (K2, D2), jnp.float32)
    b2 = 0.01 * jnp.arange(K2, dtype=jnp.float32).reshape(K2, 1)

    z2, ldj2 = planar_flow_forward(z0_2, u2, w2, b2, batch_tile=256)
    jax.block_until_ready((z2, ldj2))
    z2_ref, ldj2_ref = planar_flow_reference(z0_2, u2, w2, b2)
    np.testing.assert_allclose(np.asarray(z2), np.asarray(z2_ref), rtol=2e-5, atol=2e-5)
    np.testing.assert_allclose(np.asarray(ldj2), np.asarray(ldj2_ref), rtol=2e-5, atol=2e-5)

    print("KERNEL_OK")
</pallas_src>

<mosaic_0001>
module attributes {stable_mosaic.version = 11 : i64} {
  func.func @_planar_flow_kernel(%arg0: i32, %arg1: memref<16x32xf32, #tpu.memory_space<vmem>>, %arg2: memref<32x3xf32, #tpu.memory_space<vmem>>, %arg3: memref<32x3xf32, #tpu.memory_space<vmem>>, %arg4: memref<3xf32, #tpu.memory_space<smem>>, %arg5: memref<3x3xf32, #tpu.memory_space<smem>>, %arg6: memref<16x32xf32, #tpu.memory_space<vmem>>, %arg7: memref<1x16xf32, #tpu.memory_space<vmem>>) attributes {dimension_semantics = [#tpu.dimension_semantics<parallel>], iteration_bounds = array<i64: 1>, scalar_prefetch = 0 : i64, scratch_operands = 0 : i64, tpu.core_type = #tpu.core_type<tc>, window_params = [{transform_indices = @transform_0, window_bounds = array<i64: 16, 32>}, {pipeline_mode = #tpu.pipeline_mode<synchronous>, transform_indices = @transform_1, window_bounds = array<i64: 32, 3>}, {pipeline_mode = #tpu.pipeline_mode<synchronous>, transform_indices = @transform_2, window_bounds = array<i64: 32, 3>}, {transform_indices = @transform_3, window_bounds = array<i64: 3>}, {transform_indices = @transform_4, window_bounds = array<i64: 3, 3>}, {transform_indices = @transform_5, window_bounds = array<i64: 16, 32>}, {transform_indices = @transform_6, window_bounds = array<i64: 1, 16>}]} {
    %c0 = arith.constant 0 : index
    %c0_0 = arith.constant 0 : index
    %0 = vector.load %arg1[%c0, %c0_0] : memref<16x32xf32, #tpu.memory_space<vmem>>, vector<16x32xf32>
    %1 = tpu.transpose %0, [1, 0] : vector<16x32xf32> -> vector<32x16xf32>
    %c0_1 = arith.constant 0 : index
    %c0_2 = arith.constant 0 : index
    %2 = vector.load %arg2[%c0_1, %c0_2] : memref<32x3xf32, #tpu.memory_space<vmem>>, vector<32x1xf32>
    %3 = vector.broadcast %2 : vector<32x1xf32> to vector<32x16xf32>
    %4 = arith.mulf %3, %1 : vector<32x16xf32>
    %cst = arith.constant dense<0.000000e+00> : vector<16xf32>
    %5 = vector.multi_reduction <add>, %4, %cst [0] : vector<32x16xf32> to vector<16xf32>
    %6 = vector.shape_cast %5 : vector<16xf32> to vector<1x16xf32>
    %c0_3 = arith.constant 0 : index
    %c1 = arith.constant 1 : index
    %7 = vector.load %arg2[%c0_3, %c1] : memref<32x3xf32, #tpu.memory_space<vmem>>, vector<32x1xf32>
    %8 = vector.broadcast %7 : vector<32x1xf32> to vector<32x16xf32>
    %9 = arith.mulf %8, %1 : vector<32x16xf32>
    %cst_4 = arith.constant dense<0.000000e+00> : vector<16xf32>
    %10 = vector.multi_reduction <add>, %9, %cst_4 [0] : vector<32x16xf32> to vector<16xf32>
    %11 = vector.shape_cast %10 : vector<16xf32> to vector<1x16xf32>
    %c0_5 = arith.constant 0 : index
    %c2 = arith.constant 2 : index
    %12 = vector.load %arg2[%c0_5, %c2] : memref<32x3xf32, #tpu.memory_space<vmem>>, vector<32x1xf32>
    %13 = vector.broadcast %12 : vector<32x1xf32> to vector<32x16xf32>
    %14 = arith.mulf %13, %1 : vector<32x16xf32>
    %cst_6 = arith.constant dense<0.000000e+00> : vector<16xf32>
    %15 = vector.multi_reduction <add>, %14, %cst_6 [0] : vector<32x16xf32> to vector<16xf32>
    %16 = vector.shape_cast %15 : vector<16xf32> to vector<1x16xf32>
    %c0_7 = arith.constant 0 : index
    %17 = memref.load %arg4[%c0_7] : memref<3xf32, #tpu.memory_space<smem>>
    %18 = vector.broadcast %17 : f32 to vector<1x16xf32>
    %19 = arith.addf %6, %18 : vector<1x16xf32>
    %20 = math.tanh %19 : vector<1x16xf32>
    %21 = arith.mulf %20, %20 : vector<1x16xf32>
    %cst_8 = arith.constant 1.000000e+00 : f32
    %22 = vector.broadcast %cst_8 : f32 to vector<1x16xf32>
    %23 = arith.subf %22, %21 : vector<1x16xf32>
    %c0_9 = arith.constant 0 : index
    %c0_10 = arith.constant 0 : index
    %24 = memref.load %arg5[%c0_9, %c0_10] : memref<3x3xf32, #tpu.memory_space<smem>>
    %25 = vector.broadcast %24 : f32 to vector<1x16xf32>
    %26 = arith.mulf %23, %25 : vector<1x16xf32>
    %cst_11 = arith.constant 1.000000e+00 : f32
    %27 = vector.broadcast %cst_11 : f32 to vector<1x16xf32>
    %28 = arith.addf %27, %26 : vector<1x16xf32>
    %29 = math.absf %28 : vector<1x16xf32>
    %c1_12 = arith.constant 1 : index
    %30 = memref.load %arg4[%c1_12] : memref<3xf32, #tpu.memory_space<smem>>
    %31 = vector.broadcast %30 : f32 to vector<1x16xf32>
    %32 = arith.addf %11, %31 : vector<1x16xf32>
    %c1_13 = arith.constant 1 : index
    %c0_14 = arith.constant 0 : index
    %33 = memref.load %arg5[%c1_13, %c0_14] : memref<3x3xf32, #tpu.memory_space<smem>>
    %34 = vector.broadcast %33 : f32 to vector<1x16xf32>
    %35 = arith.mulf %34, %20 : vector<1x16xf32>
    %36 = arith.addf %32, %35 : vector<1x16xf32>
    %37 = math.tanh %36 : vector<1x16xf32>
    %38 = arith.mulf %37, %37 : vector<1x16xf32>
    %cst_15 = arith.constant 1.000000e+00 : f32
    %39 = vector.broadcast %cst_15 : f32 to vector<1x16xf32>
    %40 = arith.subf %39, %38 : vector<1x16xf32>
    %c1_16 = arith.constant 1 : index
    %c1_17 = arith.constant 1 : index
    %41 = memref.load %arg5[%c1_16, %c1_17] : memref<3x3xf32, #tpu.memory_space<smem>>
    %42 = vector.broadcast %41 : f32 to vector<1x16xf32>
    %43 = arith.mulf %40, %42 : vector<1x16xf32>
    %cst_18 = arith.constant 1.000000e+00 : f32
    %44 = vector.broadcast %cst_18 : f32 to vector<1x16xf32>
    %45 = arith.addf %44, %43 : vector<1x16xf32>
    %46 = math.absf %45 : vector<1x16xf32>
    %47 = arith.mulf %29, %46 : vector<1x16xf32>
    %c2_19 = arith.constant 2 : index
    %48 = memref.load %arg4[%c2_19] : memref<3xf32, #tpu.memory_space<smem>>
    %49 = vector.broadcast %48 : f32 to vector<1x16xf32>
    %50 = arith.addf %16, %49 : vector<1x16xf32>
    %c2_20 = arith.constant 2 : index
    %c0_21 = arith.constant 0 : index
    %51 = memref.load %arg5[%c2_20, %c0_21] : memref<3x3xf32, #tpu.memory_space<smem>>
    %52 = vector.broadcast %51 : f32 to vector<1x16xf32>
    %53 = arith.mulf %52, %20 : vector<1x16xf32>
    %54 = arith.addf %50, %53 : vector<1x16xf32>
    %c2_22 = arith.constant 2 : index
    %c1_23 = arith.constant 1 : index
    %55 = memref.load %arg5[%c2_22, %c1_23] : memref<3x3xf32, #tpu.memory_space<smem>>
    %56 = vector.broadcast %55 : f32 to vector<1x16xf32>
    %57 = arith.mulf %56, %37 : vector<1x16xf32>
    %58 = arith.addf %54, %57 : vector<1x16xf32>
    %59 = math.tanh %58 : vector<1x16xf32>
    %60 = arith.mulf %59, %59 : vector<1x16xf32>
    %cst_24 = arith.constant 1.000000e+00 : f32
    %61 = vector.broadcast %cst_24 : f32 to vector<1x16xf32>
    %62 = arith.subf %61, %60 : vector<1x16xf32>
    %c2_25 = arith.constant 2 : index
    %c2_26 = arith.constant 2 : index
    %63 = memref.load %arg5[%c2_25, %c2_26] : memref<3x3xf32, #tpu.memory_space<smem>>
    %64 = vector.broadcast %63 : f32 to vector<1x16xf32>
    %65 = arith.mulf %62, %64 : vector<1x16xf32>
    %cst_27 = arith.constant 1.000000e+00 : f32
    %66 = vector.broadcast %cst_27 : f32 to vector<1x16xf32>
    %67 = arith.addf %66, %65 : vector<1x16xf32>
    %68 = math.absf %67 : vector<1x16xf32>
    %69 = arith.mulf %47, %68 : vector<1x16xf32>
    %c0_28 = arith.constant 0 : index
    %c0_29 = arith.constant 0 : index
    %70 = vector.load %arg3[%c0_28, %c0_29] : memref<32x3xf32, #tpu.memory_space<vmem>>, vector<32x1xf32>
    %71 = vector.broadcast %70 : vector<32x1xf32> to vector<32x16xf32>
    %72 = vector.broadcast %20 : vector<1x16xf32> to vector<32x16xf32>
    %73 = arith.mulf %71, %72 : vector<32x16xf32>
    %74 = arith.addf %1, %73 : vector<32x16xf32>
    %c0_30 = arith.constant 0 : index
    %c1_31 = arith.constant 1 : index
    %75 = vector.load %arg3[%c0_30, %c1_31] : memref<32x3xf32, #tpu.memory_space<vmem>>, vector<32x1xf32>
    %76 = vector.broadcast %75 : vector<32x1xf32> to vector<32x16xf32>
    %77 = vector.broadcast %37 : vector<1x16xf32> to vector<32x16xf32>
    %78 = arith.mulf %76, %77 : vector<32x16xf32>
    %79 = arith.addf %74, %78 : vector<32x16xf32>
    %c0_32 = arith.constant 0 : index
    %c2_33 = arith.constant 2 : index
    %80 = vector.load %arg3[%c0_32, %c2_33] : memref<32x3xf32, #tpu.memory_space<vmem>>, vector<32x1xf32>
    %81 = vector.broadcast %80 : vector<32x1xf32> to vector<32x16xf32>
    %82 = vector.broadcast %59 : vector<1x16xf32> to vector<32x16xf32>
    %83 = arith.mulf %81, %82 : vector<32x16xf32>
    %84 = arith.addf %79, %83 : vector<32x16xf32>
    %85 = tpu.transpose %84, [1, 0] : vector<32x16xf32> -> vector<16x32xf32>
    %c0_34 = arith.constant 0 : index
    %c0_35 = arith.constant 0 : index
    %86 = vector.load %arg6[%c0_34, %c0_35] : memref<16x32xf32, #tpu.memory_space<vmem>>, vector<16x32xf32>
    tpu.vector_store %arg6[%c0_34, %c0_35], %85 {strides = array<i32>} : memref<16x32xf32, #tpu.memory_space<vmem>>, vector<16x32xf32>,
    %87 = math.log %69 : vector<1x16xf32>
    %c0_36 = arith.constant 0 : index
    %c0_37 = arith.constant 0 : index
    %88 = vector.load %arg7[%c0_36, %c0_37] : memref<1x16xf32, #tpu.memory_space<vmem>>, vector<1x16xf32>
    tpu.vector_store %arg7[%c0_36, %c0_37], %87 {strides = array<i32>} : memref<1x16xf32, #tpu.memory_space<vmem>>, vector<1x16xf32>,
    return
  }
  func.func @transform_0(%arg0: i32) -> (i32, i32) {
    %c0_i32 = arith.constant 0 : i32
    %c0_i32_0 = arith.constant 0 : i32
    return %arg0, %c0_i32 : i32, i32
  }
  func.func @transform_1(%arg0: i32) -> (i32, i32) {
    %c0_i32 = arith.constant 0 : i32
    %c0_i32_0 = arith.constant 0 : i32
    %c0_i32_1 = arith.constant 0 : i32
    return %c0_i32, %c0_i32_0 : i32, i32
  }
  func.func @transform_2(%arg0: i32) -> (i32, i32) {
    %c0_i32 = arith.constant 0 : i32
    %c0_i32_0 = arith.constant 0 : i32
    %c0_i32_1 = arith.constant 0 : i32
    return %c0_i32, %c0_i32_0 : i32, i32
  }
  func.func @transform_3(%arg0: i32) -> i32 {
    %c0_i32 = arith.constant 0 : i32
    %c0_i32_0 = arith.constant 0 : i32
    return %c0_i32 : i32
  }
  func.func @transform_4(%arg0: i32) -> (i32, i32) {
    %c0_i32 = arith.constant 0 : i32
    %c0_i32_0 = arith.constant 0 : i32
    %c0_i32_1 = arith.constant 0 : i32
    return %c0_i32, %c0_i32_0 : i32, i32
  }
  func.func @transform_5(%arg0: i32) -> (i32, i32) {
    %c0_i32 = arith.constant 0 : i32
    %c0_i32_0 = arith.constant 0 : i32
    return %arg0, %c0_i32 : i32, i32
  }
  func.func @transform_6(%arg0: i32) -> (i32, i32) {
    %c0_i32 = arith.constant 0 : i32
    %c0_i32_0 = arith.constant 0 : i32
    return %c0_i32, %arg0 : i32, i32
  }
}

</mosaic_0001>

<llo_original>
// kernel: tpu_custom_call.1
$region0: #{tpu_custom_call.1}
  #allocation0 [shape = 'u32[]', space=smem, size = 0x4, offset = 0x4, fixed_abs, tag = 'smem constant byte address 0x4 - core index']
  #allocation1 [shape = 'u32[144,128]{1,0:T(1,128)}', space=vmem, size = 0x12000, scoped, tag = 'internal scratch']
  %s0 = inlined_call_operand.vmem [shape: f32[16,32], index: 0, kind: input, shape index: {}]
  %s1 = inlined_call_operand.vmem [shape: f32[32,3], index: 1, kind: input, shape index: {}]
  %s2 = inlined_call_operand.vmem [shape: f32[32,3], index: 2, kind: input, shape index: {}]
  %s3 = inlined_call_operand.vmem [shape: f32[3], index: 3, kind: input, shape index: {}]
  %s4 = inlined_call_operand.vmem [shape: f32[3,3], index: 4, kind: input, shape index: {}]
  %s5 = inlined_call_operand.hbm [shape: f32[16,32], index: 5, kind: output, shape index: {0}]
  %s6 = inlined_call_operand.hbm [shape: f32[1,16], index: 6, kind: output, shape index: {1}]
  %7 = xla_tuple %s5, %s6
  %s8 = sld [smem:[#allocation0]]
  $region46: #{tpu_custom_call.1} parent=0
    _
  %s10 = ssub.s32 1, %s8
  %s11 = scalar_select 0, %s10, %s8
  $region1: #{tpu_custom_call.1} parent=0
    #allocation2 [shape = 'u8[512]{0}', space=smem, size = 0x200, scoped, tag = 'input window, operand 3, single buffered']
    #allocation3 [shape = 's32[1]{0}', space=sflag, size = 0x4, scoped, tag = 'scoped memory for tpu_custom_call.1']
    #allocation4 [shape = 's32[1]{0}', space=sflag, size = 0x4, scoped, tag = 'scoped memory for tpu_custom_call.1']
    #allocation5 [shape = 'u8[2048]{0}', space=smem, size = 0x800, scoped, tag = 'input window, operand 4, single buffered']
    #allocation6 [shape = 's32[1]{0}', space=sflag, size = 0x4, scoped, tag = 'scoped memory for tpu_custom_call.1']
    #allocation7 [shape = 'u8[8192]{0}', space=vmem, size = 0x2000, scoped, tag = 'output window, operand 0, single buffered']
    #allocation8 [shape = 'u8[512]{0}', space=vmem, size = 0x400, scoped, tag = 'output window, operand 1, single buffered']
    #allocation9 [shape = 's32[1]{0}', space=sflag, size = 0x4, scoped, tag = 'scoped memory for tpu_custom_call.1']
    %12 = vsyncpa [#allocation4], 0
    %13 = vsyncpa [#allocation6], 0
    %14 = vsyncpa [#allocation3], 0
    %15 = vsyncpa [#allocation9], 0
    // Predicated region
    $region2: #{tpu_custom_call.1} parent=1 // pred_check
      _
    $region3: #{tpu_custom_call.1} parent=1 // pred_check_branch
      %17 = sbr.rel (0) target = $region5
    $region4: #{tpu_custom_call.1} parent=1 // pred_region
      _
    $region5: #{tpu_custom_call.1} parent=1 // pred_fallthru
      _
    // Predicated region
    $region6: #{tpu_custom_call.1} parent=1 // pred_check
      _
    $region7: #{tpu_custom_call.1} parent=1 // pred_check_branch
      %19 = sbr.rel (0) target = $region9
    $region8: #{tpu_custom_call.1} parent=1 // pred_region
      _
    $region9: #{tpu_custom_call.1} parent=1 // pred_fallthru
      _
    // Predicated region
    $region10: #{tpu_custom_call.1} parent=1 // pred_check
      _
    $region11: #{tpu_custom_call.1} parent=1 // pred_check_branch
      %21 = sbr.rel (0) target = $region13
    $region12: #{tpu_custom_call.1} parent=1 // pred_region
      _
    $region13: #{tpu_custom_call.1} parent=1 // pred_fallthru
      _
    // Predicated region
    $region14: #{tpu_custom_call.1} parent=1 // pred_check
      _
    $region15: #{tpu_custom_call.1} parent=1 // pred_check_branch
      %23 = sbr.rel (0) target = $region17
    $region16: #{tpu_custom_call.1} parent=1 // pred_region
      %s25 = ssub.s32 16, 16
      %26 = vsyncadd [#allocation4], %s25
      %s28 = sshll.u32 %s3, 4
      %s29 = int_to_ptr.vmem [resolvable:$true] %s28
      %31 = dma.vmem_to_smem %s29, 16, [#allocation2], [#allocation4]
    $region17: #{tpu_custom_call.1} parent=1 // pred_fallthru
      _
    // Predicated region
    $region18: #{tpu_custom_call.1} parent=1 // pred_check
      _
    $region19: #{tpu_custom_call.1} parent=1 // pred_check_branch
      %33 = sbr.rel (0) target = $region21
    $region20: #{tpu_custom_call.1} parent=1 // pred_region
      %s35 = ssub.s32 64, 64
      %36 = vsyncadd [#allocation6], %s35
      %s38 = sshll.u32 %s4, 4
      %s39 = int_to_ptr.vmem [resolvable:$true] %s38
      %41 = dma.vmem_to_smem %s39, 64, [#allocation5], [#allocation6]
    $region21: #{tpu_custom_call.1} parent=1 // pred_fallthru
      _
    // Predicated region
    $region22: #{tpu_custom_call.1} parent=1 // pred_check
      _
    $region23: #{tpu_custom_call.1} parent=1 // pred_check_branch
      %43 = sbr.rel (0) target = $region25
    $region24: #{tpu_custom_call.1} parent=1 // pred_region
      %44 = dma.done [#allocation4], 16
    $region25: #{tpu_custom_call.1} parent=1 // pred_fallthru
      _
    // Predicated region
    $region26: #{tpu_custom_call.1} parent=1 // pred_check
      _
    $region27: #{tpu_custom_call.1} parent=1 // pred_check_branch
      %46 = sbr.rel (0) target = $region29
    $region28: #{tpu_custom_call.1} parent=1 // pred_region
      %47 = dma.done [#allocation6], 64
    $region29: #{tpu_custom_call.1} parent=1 // pred_fallthru
      _
    %48 = sfence
    %v49 = vld [vmem:[%s0] sm:$0xff]
    %v50 = vld [vmem:[%s0 + $0x8] sm:$0xff]
    %51 = vxpose.xlu0.b32.start [1/16] %v49, 128
    %52 = vxpose.xlu0.b32.cont [2/16] %v50, 128
    %53 = vxpose.xlu0.b32.cont [3/16] 0.0, 128
    %54 = vxpose.xlu0.b32.cont [4/16] 0.0, 128
    %55 = vxpose.xlu0.b32.cont [5/16] 0.0, 128
    %56 = vxpose.xlu0.b32.cont [6/16] 0.0, 128
    %57 = vxpose.xlu0.b32.cont [7/16] 0.0, 128
    %58 = vxpose.xlu0.b32.cont [8/16] 0.0, 128
    %59 = vxpose.xlu0.b32.cont [9/16] 0.0, 128
    %60 = vxpose.xlu0.b32.cont [10/16] 0.0, 128
    %61 = vxpose.xlu0.b32.cont [11/16] 0.0, 128
    %62 = vxpose.xlu0.b32.cont [12/16] 0.0, 128
    %63 = vxpose.xlu0.b32.cont [13/16] 0.0, 128
    %64 = vxpose.xlu0.b32.cont [14/16] 0.0, 128
    %65 = vxpose.xlu0.b32.cont [15/16] 0.0, 128
    %66 = vxpose.xlu0.b32.end [16/16] 0.0, 128
    %v67 = vpop.trf.xlu0
    %v68 = vpop.trf.xlu0
    %v69 = vpop.trf.xlu0
    %v70 = vpop.trf.xlu0
    %v71 = vpop.trf.xlu0
    %v72 = vpop.trf.xlu0
    %v73 = vpop.trf.xlu0
    %v74 = vpop.trf.xlu0
    %v75 = vpop.trf.xlu0
    %v76 = vpop.trf.xlu0
    %v77 = vpop.trf.xlu0
    %v78 = vpop.trf.xlu0
    %v79 = vpop.trf.xlu0
    %v80 = vpop.trf.xlu0
    %v81 = vpop.trf.xlu0
    %v82 = vpop.trf.xlu0
    %v83 = vld [vmem:[%s1] sm:$0xff]
    %v84 = vld [vmem:[%s1 + $0x8] sm:$0xff]
    %v85 = vld [vmem:[%s1 + $0x10] sm:$0xff]
    %v86 = vld [vmem:[%s1 + $0x18] sm:$0xff]
    %88 = vset.pattern.permute.xlu0 0
    %89 = vperm.xlu0 %88, %v83
    %v90 = vpop.permute.xlu0 %89
    %93 = vset.pattern.permute.xlu0 0
    %94 = vperm.xlu0 %93, %v84
    %v95 = vpop.permute.xlu0 %94
    %98 = vset.pattern.permute.xlu0 0
    %99 = vperm.xlu0 %98, %v85
    %v100 = vpop.permute.xlu0 %99
    %103 = vset.pattern.permute.xlu0 0
    %104 = vperm.xlu0 %103, %v86
    %v105 = vpop.permute.xlu0 %104
    %v107 = vmul.f32 %v90, %v67
    %v108 = vmul.f32 %v95, %v68
    %v109 = vmul.f32 %v100, %v69
    %v110 = vmul.f32 %v105, %v70
    %vm111 = vcmask 130048
    %v112 = vsel %vm111, %v107, 0.0
    %v113 = vsel %vm111, %v108, 0.0
    %v114 = vadd.f32 %v112, %v113
    %v115 = vsel %vm111, %v109, 0.0
    %v116 = vadd.f32 %v114, %v115
    %v117 = vsel %vm111, %v110, 0.0
    %v118 = vadd.f32 %v116, %v117
    %v119 = vrot.slane %v118, 4
    %v120 = vadd.f32 %v118, %v119
    %v121 = vrot.slane %v120, 2
    %v122 = vadd.f32 %v120, %v121
    %v123 = vrot.slane %v122, 1
    %v124 = vadd.f32 %v122, %v123
    %125 = vset.pattern.permute.xlu0 1
    %126 = vperm.xlu0 %125, %v83
    %v127 = vpop.permute.xlu0 %126
    %129 = vset.pattern.permute.xlu0 1
    %130 = vperm.xlu0 %129, %v84
    %v131 = vpop.permute.xlu0 %130
    %133 = vset.pattern.permute.xlu0 1
    %134 = vperm.xlu0 %133, %v85
    %v135 = vpop.permute.xlu0 %134
    %137 = vset.pattern.permute.xlu0 1
    %138 = vperm.xlu0 %137, %v86
    %v139 = vpop.permute.xlu0 %138
    %v141 = vmul.f32 %v127, %v67
    %v142 = vmul.f32 %v131, %v68
    %v143 = vmul.f32 %v135, %v69
    %v144 = vmul.f32 %v139, %v70
    %v145 = vsel %vm111, %v141, 0.0
    %v146 = vsel %vm111, %v142, 0.0
    %v147 = vadd.f32 %v145, %v146
    %v148 = vsel %vm111, %v143, 0.0
    %v149 = vadd.f32 %v147, %v148
    %v150 = vsel %vm111, %v144, 0.0
    %v151 = vadd.f32 %v149, %v150
    %v152 = vrot.slane %v151, 4
    %v153 = vadd.f32 %v151, %v152
    %v154 = vrot.slane %v153, 2
    %v155 = vadd.f32 %v153, %v154
    %v156 = vrot.slane %v155, 1
    %v157 = vadd.f32 %v155, %v156
    %158 = vset.pattern.permute.xlu0 2
    %159 = vperm.xlu0 %158, %v83
    %v160 = vpop.permute.xlu0 %159
    %162 = vset.pattern.permute.xlu0 2
    %163 = vperm.xlu0 %162, %v84
    %v164 = vpop.permute.xlu0 %163
    %166 = vset.pattern.permute.xlu0 2
    %167 = vperm.xlu0 %166, %v85
    %v168 = vpop.permute.xlu0 %167
    %170 = vset.pattern.permute.xlu0 2
    %171 = vperm.xlu0 %170, %v86
    %v172 = vpop.permute.xlu0 %171
    %v174 = vmul.f32 %v160, %v67
    %v175 = vmul.f32 %v164, %v68
    %v176 = vmul.f32 %v168, %v69
    %v177 = vmul.f32 %v172, %v70
    %v178 = vsel %vm111, %v174, 0.0
    %v179 = vsel %vm111, %v175, 0.0
    %v180 = vadd.f32 %v178, %v179
    %v181 = vsel %vm111, %v176, 0.0
    %v182 = vadd.f32 %v180, %v181
    %v183 = vsel %vm111, %v177, 0.0
    %v184 = vadd.f32 %v182, %v183
    %v185 = vrot.slane %v184, 4
    %v186 = vadd.f32 %v184, %v185
    %v187 = vrot.slane %v186, 2
    %v188 = vadd.f32 %v186, %v187
    %v189 = vrot.slane %v188, 1
    %v190 = vadd.f32 %v188, %v189
    %s191 = sld [smem:[#allocation2]]
    %v192 = vstv %s191
    %v193 = vadd.f32 %v124, %v192
    %v194 = vtanh.pop %v193
    %v195 = vmul.f32 %v194, %v194
    %v196 = vsub.f32 1.0, %v195
    %s197 = sld [smem:[#allocation5]]
    %v198 = vstv %s197
    %v199 = vmul.f32 %v196, %v198
    %v200 = vadd.f32 %v199, 1.0
    %v201 = vand.u32 2147483647, %v200
    %s202 = sld [smem:[#allocation2 + $0x1]]
    %v203 = vstv %s202
    %v204 = vadd.f32 %v157, %v203
    %s205 = sld [smem:[#allocation5 + $0x80]]
    %v206 = vstv %s205
    %v207 = vmul.f32 %v206, %v194
    %v208 = vadd.f32 %v204, %v207
    %v209 = vtanh.pop %v208
    %v210 = vmul.f32 %v209, %v209
    %v211 = vsub.f32 1.0, %v210
    %s212 = sld [smem:[#allocation5 + $0x81]]
    %v213 = vstv %s212
    %v214 = vmul.f32 %v211, %v213
    %v215 = vadd.f32 %v214, 1.0
    %v216 = vand.u32 2147483647, %v215
    %v217 = vmul.f32 %v201, %v216
    %s218 = sld [smem:[#allocation2 + $0x2]]
    %v219 = vstv %s218
    %v220 = vadd.f32 %v190, %v219
    %s221 = sld [smem:[#allocation5 + $0x100]]
    %v222 = vstv %s221
    %v223 = vmul.f32 %v222, %v194
    %v224 = vadd.f32 %v220, %v223
    %s225 = sld [smem:[#allocation5 + $0x101]]
    %v226 = vstv %s225
    %v227 = vmul.f32 %v226, %v209
    %v228 = vadd.f32 %v224, %v227
    %v229 = vtanh.pop %v228
    %v230 = vmul.f32 %v229, %v229
    %v231 = vsub.f32 1.0, %v230
    %s232 = sld [smem:[#allocation5 + $0x102]]
    %v233 = vstv %s232
    %v234 = vmul.f32 %v231, %v233
    %v235 = vadd.f32 %v234, 1.0
    %v236 = vand.u32 2147483647, %v235
    %v237 = vmul.f32 %v217, %v236
    %v238 = vld [vmem:[%s2] sm:$0xff]
    %v239 = vld [vmem:[%s2 + $0x8] sm:$0xff]
    %v240 = vld [vmem:[%s2 + $0x10] sm:$0xff]
    %v241 = vld [vmem:[%s2 + $0x18] sm:$0xff]
    %243 = vset.pattern.permute.xlu0 0
    %244 = vperm.xlu0 %243, %v238
    %v245 = vpop.permute.xlu0 %244
    %248 = vset.pattern.permute.xlu0 0
    %249 = vperm.xlu0 %248, %v239
    %v250 = vpop.permute.xlu0 %249
    %253 = vset.pattern.permute.xlu0 0
    %254 = vperm.xlu0 %253, %v240
    %v255 = vpop.permute.xlu0 %254
    %258 = vset.pattern.permute.xlu0 0
    %259 = vperm.xlu0 %258, %v241
    %v260 = vpop.permute.xlu0 %259
    %v262 = vmul.f32 %v245, %v194
    %v263 = vmul.f32 %v250, %v194
    %v264 = vmul.f32 %v255, %v194
    %v265 = vmul.f32 %v260, %v194
    %v266 = vadd.f32 %v67, %v262
    %v267 = vadd.f32 %v68, %v263
    %v268 = vadd.f32 %v69, %v264
    %v269 = vadd.f32 %v70, %v265
    %270 = vset.pattern.permute.xlu0 1
    %271 = vperm.xlu0 %270, %v238
    %v272 = vpop.permute.xlu0 %271
    %274 = vset.pattern.permute.xlu0 1
    %275 = vperm.xlu0 %274, %v239
    %v276 = vpop.permute.xlu0 %275
    %278 = vset.pattern.permute.xlu0 1
    %279 = vperm.xlu0 %278, %v240
    %v280 = vpop.permute.xlu0 %279
    %282 = vset.pattern.permute.xlu0 1
    %283 = vperm.xlu0 %282, %v241
    %v284 = vpop.permute.xlu0 %283
    %v286 = vmul.f32 %v272, %v209
    %v287 = vmul.f32 %v276, %v209
    %v288 = vmul.f32 %v280, %v209
    %v289 = vmul.f32 %v284, %v209
    %v290 = vadd.f32 %v266, %v286
    %v291 = vadd.f32 %v267, %v287
    %v292 = vadd.f32 %v268, %v288
    %v293 = vadd.f32 %v269, %v289
    %294 = vset.pattern.permute.xlu0 2
    %295 = vperm.xlu0 %294, %v238
    %v296 = vpop.permute.xlu0 %295
    %298 = vset.pattern.permute.xlu0 2
    %299 = vperm.xlu0 %298, %v239
    %v300 = vpop.permute.xlu0 %299
    %302 = vset.pattern.permute.xlu0 2
    %303 = vperm.xlu0 %302, %v240
    %v304 = vpop.permute.xlu0 %303
    %306 = vset.pattern.permute.xlu0 2
    %307 = vperm.xlu0 %306, %v241
    %v308 = vpop.permute.xlu0 %307
    %v310 = vmul.f32 %v296, %v229
    %v311 = vmul.f32 %v300, %v229
    %v312 = vmul.f32 %v304, %v229
    %v313 = vmul.f32 %v308, %v229
    %v314 = vadd.f32 %v290, %v310
    %v315 = vadd.f32 %v291, %v311
    %v316 = vadd.f32 %v292, %v312
    %v317 = vadd.f32 %v293, %v313
    %318 = vxpose.xlu0.b32.start [1/16] %v314, 128
    %319 = vxpose.xlu0.b32.cont [2/16] %v315, 128
    %320 = vxpose.xlu0.b32.cont [3/16] %v316, 128
    %321 = vxpose.xlu0.b32.cont [4/16] %v317, 128
    %322 = vxpose.xlu0.b32.cont [5/16] 0.0, 128
    %323 = vxpose.xlu0.b32.cont [6/16] 0.0, 128
    %324 = vxpose.xlu0.b32.cont [7/16] 0.0, 128
    %325 = vxpose.xlu0.b32.cont [8/16] 0.0, 128
    %326 = vxpose.xlu0.b32.cont [9/16] 0.0, 128
    %327 = vxpose.xlu0.b32.cont [10/16] 0.0, 128
    %328 = vxpose.xlu0.b32.cont [11/16] 0.0, 128
    %329 = vxpose.xlu0.b32.cont [12/16] 0.0, 128
    %330 = vxpose.xlu0.b32.cont [13/16] 0.0, 128
    %331 = vxpose.xlu0.b32.cont [14/16] 0.0, 128
    %332 = vxpose.xlu0.b32.cont [15/16] 0.0, 128
    %333 = vxpose.xlu0.b32.end [16/16] 0.0, 128
    %v334 = vpop.trf.xlu0
    %v335 = vpop.trf.xlu0
    %v336 = vpop.trf.xlu0
    %v337 = vpop.trf.xlu0
    %v338 = vpop.trf.xlu0
    %v339 = vpop.trf.xlu0
    %v340 = vpop.trf.xlu0
    %v341 = vpop.trf.xlu0
    %v342 = vpop.trf.xlu0
    %v343 = vpop.trf.xlu0
    %v344 = vpop.trf.xlu0
    %v345 = vpop.trf.xlu0
    %v346 = vpop.trf.xlu0
    %v347 = vpop.trf.xlu0
    %v348 = vpop.trf.xlu0
    %v349 = vpop.trf.xlu0
    %vm350 = vcmask 261120
    %351 = vst.msk [vmem:[#allocation7] sm:$0xff] %vm350, %v334
    %352 = vst.msk [vmem:[#allocation7 + $0x8] sm:$0xff] %vm350, %v335
    %v353 = vlog2.pop %v237
    %v354 = vmul.f32 %v353, 0.6931472
    %vm355 = vcmask 122880
    %356 = vst.msk [vmem:[#allocation8] sm:$0x1] %vm355, %v354
    // Predicated region
    $region30: #{tpu_custom_call.1} parent=1 // pred_check
      _
    $region31: #{tpu_custom_call.1} parent=1 // pred_check_branch
      %358 = sbr.rel (0) target = $region33
    $region32: #{tpu_custom_call.1} parent=1 // pred_region
      %s360 = ssub.s32 256, 256
      %361 = vsyncadd [#allocation3], %s360
      %s362 = sshll.u32 [#allocation7], 4
      %s363 = int_to_ptr.vmem [resolvable:$true] %s362
      %368 = dma.vmem_to_hbm [thread:$0]  %s363, 256, %s5, [#allocation3], 128, 128, 8
    $region33: #{tpu_custom_call.1} parent=1 // pred_fallthru
      _
    // Predicated region
    $region34: #{tpu_custom_call.1} parent=1 // pred_check
      _
    $region35: #{tpu_custom_call.1} parent=1 // pred_check_branch
      %370 = sbr.rel (0) target = $region37
    $region36: #{tpu_custom_call.1} parent=1 // pred_region
      %s372 = ssub.s32 16, 16
      %373 = vsyncadd [#allocation9], %s372
      %s375 = sshll.u32 [#allocation8], 4
      %s376 = int_to_ptr.vmem [resolvable:$true] %s375
      %378 = dma.vmem_to_hbm [thread:$0]  %s376, 16, %s6, [#allocation9]
    $region37: #{tpu_custom_call.1} parent=1 // pred_fallthru
      _
    // Predicated region
    $region38: #{tpu_custom_call.1} parent=1 // pred_check
      _
    $region39: #{tpu_custom_call.1} parent=1 // pred_check_branch
      %380 = sbr.rel (0) target = $region41
    $region40: #{tpu_custom_call.1} parent=1 // pred_region
      %381 = dma.done [#allocation3], 256
    $region41: #{tpu_custom_call.1} parent=1 // pred_fallthru
      _
    // Predicated region
    $region42: #{tpu_custom_call.1} parent=1 // pred_check
      _
    $region43: #{tpu_custom_call.1} parent=1 // pred_check_branch
      %383 = sbr.rel (0) target = $region45
    $region44: #{tpu_custom_call.1} parent=1 // pred_region
      %384 = dma.done [#allocation9], 16
    $region45: #{tpu_custom_call.1} parent=1 // pred_fallthru
      _
    %385 = vsyncpa [#allocation3], 1
    %386 = vsyncpa [#allocation9], 1
    %387 = vsyncpa [#allocation4], 1
    %388 = vsyncpa [#allocation6], 1

</llo_original>
